<compile_context>
chip_gen: v6e
topology: v6e:2x2x1
jax: 0.10.0
libtpu: 0.0.40
codegen_flags: <defaults>
</compile_context>

<pallas_src>
import jax
import jax.numpy as jnp
from jax.experimental import pallas as pl
from jax.experimental.pallas import tpu as pltpu


# --------------------------- layout selection ------------------------------ #

_LANE = 128
_MAX_COLS = 8192                      # wide lane dim -> unmasked full vst
_TARGET_BLOCK_BYTES = 2 * 1024 * 1024 # ~2 MiB per buffer; 4x (in+out, dbl-buf)
                                      # = 8 MiB, safe on v5e(16) / v6e(32) /
                                      # v7x(32 MiB scoped-VMEM defaults)


def _cdiv(a, b):
    return -(-a // b)


def _round_up(x, m):
    return _cdiv(x, m) * m


def _pick_layout(total, itemsize):
    """Choose (cols, padded_rows, block_rows) for a flat array of `total` elems."""
    # Sublane granularity per dtype: 8 (f32), 16 (bf16/f16), 32 (int8/fp8).
    g = max(8, 32 // itemsize)
    # Lane-dense columns: multiple of 128, as wide as reasonable.
    cols = min(_MAX_COLS, _round_up(max(1, _cdiv(total, g)), _LANE))
    rows = _cdiv(total, cols)
    # Largest row tile (multiple of g) whose block stays under the byte target.
    max_block_rows = max(g, (_TARGET_BLOCK_BYTES // (cols * itemsize)) // g * g)
    block_rows = min(_round_up(rows, g), max_block_rows)
    padded_rows = _round_up(rows, block_rows)
    return cols, padded_rows, block_rows


# ------------------------------- kernel ------------------------------------ #

def _scale_kernel(lam_ref, g_ref, o_ref):
    # Backward: dx = lambda * upstream_grad.
    lam = lam_ref[0]                                   # single hoisted SMEM read
    o_ref[...] = (g_ref[...] * lam).astype(o_ref.dtype)


def _scale_pallas(g, lambda_):
    orig_shape = g.shape
    orig_dtype = g.dtype
    total = g.size
    if total == 0:
        return g

    itemsize = jnp.dtype(orig_dtype).itemsize
    cols, padded_rows, block_rows = _pick_layout(total, itemsize)
    padded_total = padded_rows * cols

    flat = g.reshape(-1)
    if padded_total != total:
        # Pad irregular sizes to a whole number of full (block_rows, cols)
        # tiles instead of falling back to (1, N) or whole-array blocks.
        flat = jnp.pad(flat, (0, padded_total - total))
    g2 = flat.reshape(padded_rows, cols)

    lam = jnp.asarray(lambda_, dtype=jnp.float32).reshape((1,))

    out = pl.pallas_call(
        _scale_kernel,
        out_shape=jax.ShapeDtypeStruct((padded_rows, cols), orig_dtype),
        grid=(padded_rows // block_rows,),
        in_specs=[
            pl.BlockSpec(memory_space=pltpu.SMEM),               # lambda scalar
            pl.BlockSpec((block_rows, cols), lambda i: (i, 0)),  # grads
        ],
        out_specs=pl.BlockSpec((block_rows, cols), lambda i: (i, 0)),
        compiler_params=pltpu.CompilerParams(
            dimension_semantics=("parallel",)),
    )(lam, g2)

    out_flat = out.reshape(-1)
    if padded_total != total:
        out_flat = out_flat[:total]
    return out_flat.reshape(orig_shape)


# ------------------------ module-equivalent API ---------------------------- #

@jax.custom_vjp
def gradient_reversal(x, lambda_):
    """Forward = identity; backward multiplies grads by lambda_."""
    return x  # identity: JAX arrays are immutable, no copy needed


def _gr_fwd(x, lambda_):
    return x, (jnp.asarray(lambda_, dtype=x.dtype),)


def _gr_bwd(res, g):
    (lambda_,) = res
    dx = _scale_pallas(g, lambda_)
    # PyTorch returns None for lambda's grad; zero cotangent is equivalent.
    return dx, jnp.zeros_like(lambda_)


gradient_reversal.defvjp(_gr_fwd, _gr_bwd)


class GradientReversal:
    """Stateless JAX/Pallas equivalent of the PyTorch GradientReversal module."""

    def __call__(self, x, lambda_):
        return gradient_reversal(x, lambda_)


# --------------------------------- main ------------------------------------ #

if __name__ == "__main__":
    key = jax.random.PRNGKey(0)
    # NCHW, small shapes consistent with a typical feature map.
    x = jax.random.normal(key, (2, 4, 16, 16), dtype=jnp.float32)
    lambda_ = 0.5

    mod = GradientReversal()

    # Forward (identity, no kernel launch).
    y = mod(x, lambda_)
    jax.block_until_ready(y)
    assert y.shape == x.shape and y.dtype == x.dtype
    assert bool(jnp.allclose(y, x)), "forward must be identity"

    # Backward check: grads should be scaled by lambda_ (Pallas kernel path).
    def loss(inp):
        return jnp.sum(gradient_reversal(inp, lambda_) * 2.0)

    dx = jax.grad(loss)(x)
    jax.block_until_ready(dx)
    assert bool(jnp.allclose(dx, jnp.full_like(x, 2.0 * lambda_), atol=1e-6))

    # Exercise the irregular-size padding path (total not a multiple of 128).
    x2 = jax.random.normal(jax.random.PRNGKey(1), (3, 5, 7), dtype=jnp.float32)
    dx2 = jax.grad(lambda a: jnp.sum(gradient_reversal(a, -1.0)))(x2)
    jax.block_until_ready(dx2)
    assert bool(jnp.allclose(dx2, jnp.full_like(x2, -1.0), atol=1e-6))

    print("KERNEL_OK")
</pallas_src>

<mosaic_0001>
module attributes {stable_mosaic.version = 11 : i64} {
  func.func @_scale_kernel(%arg0: i32, %arg1: memref<1xf32, #tpu.memory_space<smem>>, %arg2: memref<8x256xf32, #tpu.memory_space<vmem>>, %arg3: memref<8x256xf32, #tpu.memory_space<vmem>>) attributes {dimension_semantics = [#tpu.dimension_semantics<parallel>], iteration_bounds = array<i64: 1>, scalar_prefetch = 0 : i64, scratch_operands = 0 : i64, tpu.core_type = #tpu.core_type<tc>, window_params = [{transform_indices = @transform_0, window_bounds = array<i64: 1>}, {transform_indices = @transform_1, window_bounds = array<i64: 8, 256>}, {transform_indices = @transform_2, window_bounds = array<i64: 8, 256>}]} {
    %c0 = arith.constant 0 : index
    %0 = memref.load %arg1[%c0] : memref<1xf32, #tpu.memory_space<smem>>
    %c0_0 = arith.constant 0 : index
    %c0_1 = arith.constant 0 : index
    %1 = vector.load %arg2[%c0_0, %c0_1] : memref<8x256xf32, #tpu.memory_space<vmem>>, vector<8x256xf32>
    %2 = vector.broadcast %0 : f32 to vector<8x256xf32>
    %3 = arith.mulf %1, %2 : vector<8x256xf32>
    %c0_2 = arith.constant 0 : index
    %c0_3 = arith.constant 0 : index
    %4 = vector.load %arg3[%c0_2, %c0_3] : memref<8x256xf32, #tpu.memory_space<vmem>>, vector<8x256xf32>
    tpu.vector_store %arg3[%c0_2, %c0_3], %3 {strides = array<i32>} : memref<8x256xf32, #tpu.memory_space<vmem>>, vector<8x256xf32>,
    return
  }
  func.func @transform_0(%arg0: i32) -> i32 {
    %c0_i32 = arith.constant 0 : i32
    %c0_i32_0 = arith.constant 0 : i32
    return %c0_i32 : i32
  }
  func.func @transform_1(%arg0: i32) -> (i32, i32) {
    %c0_i32 = arith.constant 0 : i32
    %c0_i32_0 = arith.constant 0 : i32
    return %arg0, %c0_i32 : i32, i32
  }
  func.func @transform_2(%arg0: i32) -> (i32, i32) {
    %c0_i32 = arith.constant 0 : i32
    %c0_i32_0 = arith.constant 0 : i32
    return %arg0, %c0_i32 : i32, i32
  }
}

</mosaic_0001>

<llo_original>
// kernel: tpu_custom_call.1
$region0: #{tpu_custom_call.1}
  #allocation0 [shape = 'u32[]', space=smem, size = 0x4, offset = 0x4, fixed_abs, tag = 'smem constant byte address 0x4 - core index']
  #allocation1 [shape = 'u32[144,128]{1,0:T(1,128)}', space=vmem, size = 0x12000, scoped, tag = 'internal scratch']
  #allocation2 [shape = 'f32[1]{0:T(128)S(6)}', space=smem, size = 0x200, scoped, tag = 'scoped memory for tpu_custom_call.1']
  %s0 = inlined_call_operand.<no memory space> [shape: f32[1], index: 0, kind: input, shape index: {}]
  %s1 = inlined_call_operand.hbm [shape: f32[8,256], index: 1, kind: input, shape index: {}]
  %s2 = inlined_call_operand.hbm [shape: f32[8,256], index: 2, kind: output, shape index: {}]
  %s3 = sld [smem:[#allocation0]]
  $region22: #{tpu_custom_call.1} parent=0
    _
  %s5 = ssub.s32 1, %s3
  %s6 = scalar_select 0, %s5, %s3
  %7 = sst [smem:[#allocation2]] %s0
  $region1: #{tpu_custom_call.1} parent=0
    #allocation3 [shape = 'u8[8192]{0}', space=vmem, size = 0x2000, scoped, tag = 'input window, operand 1, single buffered']
    #allocation4 [shape = 's32[1]{0}', space=sflag, size = 0x4, scoped, tag = 'scoped memory for tpu_custom_call.1']
    #allocation5 [shape = 's32[1]{0}', space=sflag, size = 0x4, scoped, tag = 'scoped memory for tpu_custom_call.1']
    #allocation6 [shape = 'u8[8192]{0}', space=vmem, size = 0x2000, scoped, tag = 'output window, operand 0, single buffered']
    %8 = vsyncpa [#allocation4], 0
    %9 = vsyncpa [#allocation5], 0
    // Predicated region
    $region2: #{tpu_custom_call.1} parent=1 // pred_check
      _
    $region3: #{tpu_custom_call.1} parent=1 // pred_check_branch
      %11 = sbr.rel (0) target = $region5
    $region4: #{tpu_custom_call.1} parent=1 // pred_region
      _
    $region5: #{tpu_custom_call.1} parent=1 // pred_fallthru
      _
    // Predicated region
    $region6: #{tpu_custom_call.1} parent=1 // pred_check
      _
    $region7: #{tpu_custom_call.1} parent=1 // pred_check_branch
      %13 = sbr.rel (0) target = $region9
    $region8: #{tpu_custom_call.1} parent=1 // pred_region
      %s15 = ssub.s32 256, 256
      %16 = vsyncadd [#allocation4], %s15
      %s18 = sshll.u32 [#allocation3], 4
      %s19 = int_to_ptr.vmem [resolvable:$true] %s18
      %21 = dma.hbm_to_vmem [thread:$0]  %s1, 256, %s19, [#allocation4]
    $region9: #{tpu_custom_call.1} parent=1 // pred_fallthru
      _
    // Predicated region
    $region10: #{tpu_custom_call.1} parent=1 // pred_check
      _
    $region11: #{tpu_custom_call.1} parent=1 // pred_check_branch
      %23 = sbr.rel (0) target = $region13
    $region12: #{tpu_custom_call.1} parent=1 // pred_region
      %24 = dma.done [#allocation4], 256
    $region13: #{tpu_custom_call.1} parent=1 // pred_fallthru
      _
    %s25 = sld [smem:[#allocation2]]
    %v26 = vld [vmem:[#allocation3] sm:$0xff]
    %v27 = vld [vmem:[#allocation3 + $0x8] sm:$0xff]
    %v28 = vstv %s25
    %v29 = vmul.f32 %v26, %v28
    %v30 = vmul.f32 %v27, %v28
    %31 = vst [vmem:[#allocation6] sm:$0xff] %v29
    %32 = vst [vmem:[#allocation6 + $0x8] sm:$0xff] %v30
    // Predicated region
    $region14: #{tpu_custom_call.1} parent=1 // pred_check
      _
    $region15: #{tpu_custom_call.1} parent=1 // pred_check_branch
      %34 = sbr.rel (0) target = $region17
    $region16: #{tpu_custom_call.1} parent=1 // pred_region
      %s36 = ssub.s32 256, 256
      %37 = vsyncadd [#allocation5], %s36
      %s39 = sshll.u32 [#allocation6], 4
      %s40 = int_to_ptr.vmem [resolvable:$true] %s39
      %42 = dma.vmem_to_hbm [thread:$0]  %s40, 256, %s2, [#allocation5]
    $region17: #{tpu_custom_call.1} parent=1 // pred_fallthru
      _
    // Predicated region
    $region18: #{tpu_custom_call.1} parent=1 // pred_check
      _
    $region19: #{tpu_custom_call.1} parent=1 // pred_check_branch
      %44 = sbr.rel (0) target = $region21
    $region20: #{tpu_custom_call.1} parent=1 // pred_region
      %45 = dma.done [#allocation5], 256
    $region21: #{tpu_custom_call.1} parent=1 // pred_fallthru
      _
    %46 = vsyncpa [#allocation4], 1
    %47 = vsyncpa [#allocation5], 1

</llo_original>
